<compile_context>
chip_gen: v7x
topology: tpu7x:2x2x1
jax: 0.10.0
libtpu: 0.0.40
codegen_flags: <defaults>
</compile_context>

<pallas_src>
import functools

import jax
import jax.numpy as jnp
from jax import lax
from jax.experimental import pallas as pl
from jax.experimental.pallas import tpu as pltpu

HIDDEN = 32        # config.hidden_size
PROJ = 16          # config.projection_size
BATCH = 8          # batch size for the demo
TEMPERATURE = 0.07 # config.cl_temperature


# -----------------------------------------------------------------------------
# Fused kernel: packed projection heads + normalize + LayerNorm + sims + CE loss
# -----------------------------------------------------------------------------
def _fused_cl_kernel(base_ref, logical_ref, p_ref, o_ref, x_sc, *,
                     batch, hidden, proj, inv_temp):
    B, H, P = batch, hidden, proj
    W = p_ref.shape[1]                    # slab lane width (= 2H here)

    # Static views into the packed parameter slab.
    w1 = p_ref[0:H, :]                    # (H, 2H)  [w1_base | w1_logical]
    w2 = p_ref[H:3 * H, :]                # (2H, W)  block-diag(w2_b, w2_l), zero-padded
    r = 3 * H
    b1 = p_ref[r:r + 1, :]                # (1, 2H)  [b1_base | b1_logical]
    b2 = p_ref[r + 1:r + 2, :]            # (1, W)   [b2_base | b2_logical | 0...]
    gamma = p_ref[r + 2:r + 3, 0:P]       # (1, P)
    beta = p_ref[r + 3:r + 4, 0:P]        # (1, P)

    # Stack base / logical rows inside VMEM (no wrapper-side concat dispatch).
    x_sc[0:B, :] = base_ref[...]
    x_sc[B:2 * B, :] = logical_ref[...]
    x = x_sc[...]                         # (2B, H)

    # One MXU matmul per layer for BOTH heads (f32 accumulation).
    h = jnp.maximum(
        jnp.dot(x, w1, preferred_element_type=jnp.float32) + b1, 0.0)   # (2B, 2H)
    y = jnp.dot(h, w2, preferred_element_type=jnp.float32) + b2         # (2B, W)
    y_b = y[:B, 0:P]                      # base rows -> base head block
    y_l = y[B:, P:2 * P]                  # logical rows -> logical head block

    def norm_ln(v, scale):
        # F.normalize(dim=-1, eps=1e-12): v * rsqrt(max(sum(v^2), 1e-24))  (EUP)
        v = v * lax.rsqrt(jnp.maximum(jnp.sum(v * v, axis=-1, keepdims=True),
                                      1e-24))
        # nn.LayerNorm(projection_size), eps=1e-5 (shared params across heads)
        mu = jnp.mean(v, axis=-1, keepdims=True)
        var = jnp.mean((v - mu) ** 2, axis=-1, keepdims=True)
        z = (v - mu) * lax.rsqrt(var + 1e-5)
        return (z * gamma + beta) * scale

    z1 = norm_ln(y_b, inv_temp)           # fold 1/T here: B*P muls, not B*B
    z2 = norm_ln(y_l, 1.0)

    # Diagonal of (z1 @ z2.T): elementwise product + row reduce (no iota/mask).
    picked = jnp.sum(z1 * z2, axis=-1, keepdims=True)                   # (B, 1)

    # sims = (z1 @ z2.T) / T  -- contracted-RHS dot_general, no XLU transpose.
    sims = lax.dot_general(z1, z2, (((1,), (1,)), ((), ())),
                           preferred_element_type=jnp.float32)          # (B, B)

    # Cross-entropy with labels = arange(B), reduction='mean'.
    row_max = jnp.max(sims, axis=-1, keepdims=True)
    lse = jnp.log(jnp.sum(jnp.exp(sims - row_max), axis=-1,
                          keepdims=True)) + row_max
    o_ref[0, 0] = jnp.mean(lse - picked)


def fused_contrastive_loss(base, logical, slab, *, batch, hidden, proj,
                           temperature):
    kern = functools.partial(_fused_cl_kernel, batch=batch, hidden=hidden,
                             proj=proj, inv_temp=1.0 / temperature)
    vmem = pl.BlockSpec(memory_space=pltpu.MemorySpace.VMEM)
    W = slab.shape[1]
    flops = (2 * (2 * batch) * hidden * (2 * hidden)       # layer 1
             + 2 * (2 * batch) * (2 * hidden) * W          # layer 2
             + 2 * batch * proj * batch)                   # sims
    transcendentals = batch * batch + 6 * batch            # exp/log/rsqrt approx
    bytes_accessed = 4 * (2 * batch * hidden + slab.size + 1)
    out = pl.pallas_call(
        kern,
        out_shape=jax.ShapeDtypeStruct((1, 1), jnp.float32),
        in_specs=[vmem, vmem, vmem],
        out_specs=pl.BlockSpec(memory_space=pltpu.MemorySpace.SMEM),
        scratch_shapes=[pltpu.VMEM((2 * batch, hidden), jnp.float32)],
        cost_estimate=pl.CostEstimate(flops=flops,
                                      transcendentals=transcendentals,
                                      bytes_accessed=bytes_accessed),
    )(base, logical, slab)
    return out[0, 0]


# -----------------------------------------------------------------------------
# Parameter packing (done once, outside the hot path)
# -----------------------------------------------------------------------------
def pack_params(params):
    w1b, b1b, w2b, b2b = params["base"]
    w1l, b1l, w2l, b2l = params["logical"]
    H = w1b.shape[0]
    P = w2b.shape[1]
    W = 2 * H                                         # slab lane width (P <= H)

    w1 = jnp.concatenate([w1b, w1l], axis=1)          # (H, 2H)
    w2 = jnp.zeros((2 * H, W), jnp.float32)           # block-diag, zero-padded
    w2 = w2.at[:H, :P].set(w2b).at[H:, P:2 * P].set(w2l)

    def row(v):
        return jnp.pad(v, (0, W - v.shape[0]))[None, :]

    vec_rows = jnp.concatenate(
        [row(jnp.concatenate([b1b, b1l])),            # (1, 2H)
         row(jnp.concatenate([b2b, b2l])),            # (1, 2P) zero-padded
         row(params["ln_gamma"]), row(params["ln_beta"]),
         jnp.zeros((4, W), jnp.float32)],             # pad rows to 8 sublanes
        axis=0)

    slab = jnp.concatenate([w1, w2, vec_rows], axis=0)  # (3H + 8, W) = (104, 64)
    return {"slab": slab, "hidden": H, "proj": P}


# -----------------------------------------------------------------------------
# Module forward
# -----------------------------------------------------------------------------
def contrastive_forward(packed, base_embeddings, logical_embeddings,
                        reasoning_states=None, temperature=TEMPERATURE):
    if reasoning_states is not None:
        # TODO(synk): the PyTorch original also fails here — labels arange(2B)
        # exceed the B similarity columns, so F.cross_entropy raises; we surface
        # the same invalid configuration explicitly instead of silently
        # computing a different loss.
        raise ValueError("reasoning_states path is invalid: labels arange(2B) "
                         "exceed the B columns of the similarity matrix")
    return fused_contrastive_loss(
        base_embeddings, logical_embeddings, packed["slab"],
        batch=base_embeddings.shape[0], hidden=packed["hidden"],
        proj=packed["proj"], temperature=temperature)


# -----------------------------------------------------------------------------
# Deterministic parameter init (weights stored pre-transposed: (in, out))
# -----------------------------------------------------------------------------
def init_params(key):
    def head(k):
        k1, k2, k3, k4 = jax.random.split(k, 4)
        w1 = jax.random.normal(k1, (HIDDEN, HIDDEN), jnp.float32) * 0.05
        b1 = jax.random.normal(k2, (HIDDEN,), jnp.float32) * 0.05
        w2 = jax.random.normal(k3, (HIDDEN, PROJ), jnp.float32) * 0.05
        b2 = jax.random.normal(k4, (PROJ,), jnp.float32) * 0.05
        return (w1, b1, w2, b2)

    kb, kl, kr = jax.random.split(key, 3)
    return {
        "base": head(kb),
        "logical": head(kl),
        "reasoning": head(kr),   # structural parity; unused (see TODO above)
        "ln_gamma": jnp.ones((PROJ,), jnp.float32),
        "ln_beta": jnp.zeros((PROJ,), jnp.float32),
    }


# -----------------------------------------------------------------------------
# Pure-JAX reference (correctness check)
# -----------------------------------------------------------------------------
def _ref_projection(x, w1, b1, w2, b2, g, beta):
    h = jnp.maximum(x @ w1 + b1, 0.0)
    y = h @ w2 + b2
    y = y / jnp.maximum(jnp.linalg.norm(y, axis=-1, keepdims=True), 1e-12)
    mu = jnp.mean(y, axis=-1, keepdims=True)
    var = jnp.mean((y - mu) ** 2, axis=-1, keepdims=True)
    return (y - mu) / jnp.sqrt(var + 1e-5) * g + beta


def _ref_forward(params, base, logical):
    z1 = _ref_projection(base, *params["base"],
                         params["ln_gamma"], params["ln_beta"])
    z2 = _ref_projection(logical, *params["logical"],
                         params["ln_gamma"], params["ln_beta"])
    sims = (z1 @ z2.T) / TEMPERATURE
    labels = jnp.arange(base.shape[0])
    lse = jax.nn.logsumexp(sims, axis=-1)
    picked = sims[jnp.arange(sims.shape[0]), labels]
    return jnp.mean(lse - picked)


if __name__ == "__main__":
    key = jax.random.PRNGKey(0)
    kp, kx, ky = jax.random.split(key, 3)
    params = init_params(kp)
    packed = pack_params(params)

    base_embeddings = jax.random.normal(kx, (BATCH, HIDDEN), jnp.float32)
    logical_embeddings = jax.random.normal(ky, (BATCH, HIDDEN), jnp.float32)

    loss = contrastive_forward(packed, base_embeddings, logical_embeddings,
                               reasoning_states=None)
    loss = jax.block_until_ready(loss)

    ref = _ref_forward(params, base_embeddings, logical_embeddings)
    assert jnp.allclose(loss, ref, rtol=1e-4, atol=1e-4), (loss, ref)

    print("KERNEL_OK")
</pallas_src>

<mosaic_0001>
module attributes {stable_mosaic.version = 11 : i64} {
  func.func @_fused_cl_kernel(%arg0: memref<8x32xf32, #tpu.memory_space<vmem>>, %arg1: memref<8x32xf32, #tpu.memory_space<vmem>>, %arg2: memref<104x64xf32, #tpu.memory_space<vmem>>, %arg3: memref<1x1xf32, #tpu.memory_space<smem>>, %arg4: memref<16x32xf32, #tpu.memory_space<vmem>>) attributes {dimension_semantics = [], scalar_prefetch = 0 : i64, scratch_operands = 1 : i64, tpu.core_type = #tpu.core_type<tc>} {
    %c0 = arith.constant 0 : index
    %c0_0 = arith.constant 0 : index
    %0 = vector.load %arg2[%c0, %c0_0] : memref<104x64xf32, #tpu.memory_space<vmem>>, vector<32x64xf32>
    %c32 = arith.constant 32 : index
    %c0_1 = arith.constant 0 : index
    %1 = vector.load %arg2[%c32, %c0_1] : memref<104x64xf32, #tpu.memory_space<vmem>>, vector<64x64xf32>
    %c96 = arith.constant 96 : index
    %c0_2 = arith.constant 0 : index
    %2 = vector.load %arg2[%c96, %c0_2] : memref<104x64xf32, #tpu.memory_space<vmem>>, vector<1x64xf32>
    %c97 = arith.constant 97 : index
    %c0_3 = arith.constant 0 : index
    %3 = vector.load %arg2[%c97, %c0_3] : memref<104x64xf32, #tpu.memory_space<vmem>>, vector<1x64xf32>
    %c98 = arith.constant 98 : index
    %c0_4 = arith.constant 0 : index
    %4 = vector.load %arg2[%c98, %c0_4] : memref<104x64xf32, #tpu.memory_space<vmem>>, vector<1x16xf32>
    %c99 = arith.constant 99 : index
    %c0_5 = arith.constant 0 : index
    %5 = vector.load %arg2[%c99, %c0_5] : memref<104x64xf32, #tpu.memory_space<vmem>>, vector<1x16xf32>
    %c0_6 = arith.constant 0 : index
    %c0_7 = arith.constant 0 : index
    %6 = vector.load %arg0[%c0_6, %c0_7] : memref<8x32xf32, #tpu.memory_space<vmem>>, vector<8x32xf32>
    %c0_8 = arith.constant 0 : index
    %c0_9 = arith.constant 0 : index
    %7 = vector.load %arg4[%c0_8, %c0_9] : memref<16x32xf32, #tpu.memory_space<vmem>>, vector<8x32xf32>
    tpu.vector_store %arg4[%c0_8, %c0_9], %6 {strides = array<i32>} : memref<16x32xf32, #tpu.memory_space<vmem>>, vector<8x32xf32>,
    %c0_10 = arith.constant 0 : index
    %c0_11 = arith.constant 0 : index
    %8 = vector.load %arg1[%c0_10, %c0_11] : memref<8x32xf32, #tpu.memory_space<vmem>>, vector<8x32xf32>
    %c8 = arith.constant 8 : index
    %c0_12 = arith.constant 0 : index
    %9 = vector.load %arg4[%c8, %c0_12] : memref<16x32xf32, #tpu.memory_space<vmem>>, vector<8x32xf32>
    tpu.vector_store %arg4[%c8, %c0_12], %8 {strides = array<i32>} : memref<16x32xf32, #tpu.memory_space<vmem>>, vector<8x32xf32>,
    %c0_13 = arith.constant 0 : index
    %c0_14 = arith.constant 0 : index
    %10 = vector.load %arg4[%c0_13, %c0_14] : memref<16x32xf32, #tpu.memory_space<vmem>>, vector<16x32xf32>
    %cst = arith.constant dense<0.000000e+00> : vector<16x64xf32>
    %11 = tpu.matmul %10, %0, %cst {dimension_numbers = #tpu.dot_dimension_numbers<[1], [0], [0], [1], [0, 0, 1, 1], [], []>} : vector<16x32xf32>, vector<32x64xf32>, vector<16x64xf32> -> vector<16x64xf32>
    %12 = vector.broadcast %2 : vector<1x64xf32> to vector<16x64xf32>
    %13 = arith.addf %11, %12 : vector<16x64xf32>
    %cst_15 = arith.constant 0.000000e+00 : f32
    %14 = vector.broadcast %cst_15 : f32 to vector<16x64xf32>
    %15 = arith.maximumf %13, %14 : vector<16x64xf32>
    %cst_16 = arith.constant dense<0.000000e+00> : vector<16x64xf32>
    %16 = tpu.matmul %15, %1, %cst_16 {dimension_numbers = #tpu.dot_dimension_numbers<[1], [0], [0], [1], [0, 0, 1, 1], [], []>} : vector<16x64xf32>, vector<64x64xf32>, vector<16x64xf32> -> vector<16x64xf32>
    %17 = vector.broadcast %3 : vector<1x64xf32> to vector<16x64xf32>
    %18 = arith.addf %16, %17 : vector<16x64xf32>
    %19 = vector.extract_strided_slice %18 {offsets = [0, 0], sizes = [8, 16], strides = [1, 1]} : vector<16x64xf32> to vector<8x16xf32>
    %20 = vector.extract_strided_slice %18 {offsets = [8, 16], sizes = [8, 16], strides = [1, 1]} : vector<16x64xf32> to vector<8x16xf32>
    %21 = arith.mulf %19, %19 : vector<8x16xf32>
    %cst_17 = arith.constant dense<0.000000e+00> : vector<8xf32>
    %22 = vector.multi_reduction <add>, %21, %cst_17 [1] : vector<8x16xf32> to vector<8xf32>
    %23 = vector.shape_cast %22 : vector<8xf32> to vector<8x1xf32>
    %cst_18 = arith.constant 1.000000e-24 : f32
    %24 = vector.broadcast %cst_18 : f32 to vector<8x1xf32>
    %25 = arith.maximumf %23, %24 : vector<8x1xf32>
    %26 = math.rsqrt %25 : vector<8x1xf32>
    %27 = vector.broadcast %26 : vector<8x1xf32> to vector<8x16xf32>
    %28 = arith.mulf %19, %27 : vector<8x16xf32>
    %cst_19 = arith.constant dense<0.000000e+00> : vector<8xf32>
    %29 = vector.multi_reduction <add>, %28, %cst_19 [1] : vector<8x16xf32> to vector<8xf32>
    %30 = vector.shape_cast %29 : vector<8xf32> to vector<8x1xf32>
    %cst_20 = arith.constant 1.600000e+01 : f32
    %31 = vector.broadcast %cst_20 : f32 to vector<8x1xf32>
    %32 = arith.divf %30, %31 : vector<8x1xf32>
    %33 = vector.broadcast %32 : vector<8x1xf32> to vector<8x16xf32>
    %34 = arith.subf %28, %33 : vector<8x16xf32>
    %35 = arith.mulf %34, %34 : vector<8x16xf32>
    %cst_21 = arith.constant dense<0.000000e+00> : vector<8xf32>
    %36 = vector.multi_reduction <add>, %35, %cst_21 [1] : vector<8x16xf32> to vector<8xf32>
    %37 = vector.shape_cast %36 : vector<8xf32> to vector<8x1xf32>
    %cst_22 = arith.constant 1.600000e+01 : f32
    %38 = vector.broadcast %cst_22 : f32 to vector<8x1xf32>
    %39 = arith.divf %37, %38 : vector<8x1xf32>
    %40 = vector.broadcast %32 : vector<8x1xf32> to vector<8x16xf32>
    %41 = arith.subf %28, %40 : vector<8x16xf32>
    %cst_23 = arith.constant 9.99999974E-6 : f32
    %42 = vector.broadcast %cst_23 : f32 to vector<8x1xf32>
    %43 = arith.addf %39, %42 : vector<8x1xf32>
    %44 = math.rsqrt %43 : vector<8x1xf32>
    %45 = vector.broadcast %44 : vector<8x1xf32> to vector<8x16xf32>
    %46 = arith.mulf %41, %45 : vector<8x16xf32>
    %47 = vector.broadcast %4 : vector<1x16xf32> to vector<8x16xf32>
    %48 = arith.mulf %46, %47 : vector<8x16xf32>
    %49 = vector.broadcast %5 : vector<1x16xf32> to vector<8x16xf32>
    %50 = arith.addf %48, %49 : vector<8x16xf32>
    %cst_24 = arith.constant 14.2857141 : f32
    %51 = vector.broadcast %cst_24 : f32 to vector<8x16xf32>
    %52 = arith.mulf %50, %51 : vector<8x16xf32>
    %53 = arith.mulf %20, %20 : vector<8x16xf32>
    %cst_25 = arith.constant dense<0.000000e+00> : vector<8xf32>
    %54 = vector.multi_reduction <add>, %53, %cst_25 [1] : vector<8x16xf32> to vector<8xf32>
    %55 = vector.shape_cast %54 : vector<8xf32> to vector<8x1xf32>
    %cst_26 = arith.constant 1.000000e-24 : f32
    %56 = vector.broadcast %cst_26 : f32 to vector<8x1xf32>
    %57 = arith.maximumf %55, %56 : vector<8x1xf32>
    %58 = math.rsqrt %57 : vector<8x1xf32>
    %59 = vector.broadcast %58 : vector<8x1xf32> to vector<8x16xf32>
    %60 = arith.mulf %20, %59 : vector<8x16xf32>
    %cst_27 = arith.constant dense<0.000000e+00> : vector<8xf32>
    %61 = vector.multi_reduction <add>, %60, %cst_27 [1] : vector<8x16xf32> to vector<8xf32>
    %62 = vector.shape_cast %61 : vector<8xf32> to vector<8x1xf32>
    %cst_28 = arith.constant 1.600000e+01 : f32
    %63 = vector.broadcast %cst_28 : f32 to vector<8x1xf32>
    %64 = arith.divf %62, %63 : vector<8x1xf32>
    %65 = vector.broadcast %64 : vector<8x1xf32> to vector<8x16xf32>
    %66 = arith.subf %60, %65 : vector<8x16xf32>
    %67 = arith.mulf %66, %66 : vector<8x16xf32>
    %cst_29 = arith.constant dense<0.000000e+00> : vector<8xf32>
    %68 = vector.multi_reduction <add>, %67, %cst_29 [1] : vector<8x16xf32> to vector<8xf32>
    %69 = vector.shape_cast %68 : vector<8xf32> to vector<8x1xf32>
    %cst_30 = arith.constant 1.600000e+01 : f32
    %70 = vector.broadcast %cst_30 : f32 to vector<8x1xf32>
    %71 = arith.divf %69, %70 : vector<8x1xf32>
    %72 = vector.broadcast %64 : vector<8x1xf32> to vector<8x16xf32>
    %73 = arith.subf %60, %72 : vector<8x16xf32>
    %cst_31 = arith.constant 9.99999974E-6 : f32
    %74 = vector.broadcast %cst_31 : f32 to vector<8x1xf32>
    %75 = arith.addf %71, %74 : vector<8x1xf32>
    %76 = math.rsqrt %75 : vector<8x1xf32>
    %77 = vector.broadcast %76 : vector<8x1xf32> to vector<8x16xf32>
    %78 = arith.mulf %73, %77 : vector<8x16xf32>
    %79 = vector.broadcast %4 : vector<1x16xf32> to vector<8x16xf32>
    %80 = arith.mulf %78, %79 : vector<8x16xf32>
    %81 = vector.broadcast %5 : vector<1x16xf32> to vector<8x16xf32>
    %82 = arith.addf %80, %81 : vector<8x16xf32>
    %cst_32 = arith.constant 1.000000e+00 : f32
    %83 = vector.broadcast %cst_32 : f32 to vector<8x16xf32>
    %84 = arith.mulf %82, %83 : vector<8x16xf32>
    %85 = arith.mulf %52, %84 : vector<8x16xf32>
    %cst_33 = arith.constant dense<0.000000e+00> : vector<8xf32>
    %86 = vector.multi_reduction <add>, %85, %cst_33 [1] : vector<8x16xf32> to vector<8xf32>
    %87 = vector.shape_cast %86 : vector<8xf32> to vector<8x1xf32>
    %cst_34 = arith.constant dense<0.000000e+00> : vector<8x8xf32>
    %88 = tpu.matmul %52, %84, %cst_34 {dimension_numbers = #tpu.dot_dimension_numbers<[1], [1], [0], [0], [0, 0, 1, 0], [], []>} : vector<8x16xf32>, vector<8x16xf32>, vector<8x8xf32> -> vector<8x8xf32>
    %cst_35 = arith.constant dense<0xFF800000> : vector<8xf32>
    %89 = vector.multi_reduction <maximumf>, %88, %cst_35 [1] : vector<8x8xf32> to vector<8xf32>
    %90 = vector.shape_cast %89 : vector<8xf32> to vector<8x1xf32>
    %91 = vector.broadcast %90 : vector<8x1xf32> to vector<8x8xf32>
    %92 = arith.subf %88, %91 : vector<8x8xf32>
    %93 = math.exp %92 : vector<8x8xf32>
    %cst_36 = arith.constant dense<0.000000e+00> : vector<8xf32>
    %94 = vector.multi_reduction <add>, %93, %cst_36 [1] : vector<8x8xf32> to vector<8xf32>
    %95 = vector.shape_cast %94 : vector<8xf32> to vector<8x1xf32>
    %96 = math.log %95 : vector<8x1xf32>
    %97 = arith.addf %96, %90 : vector<8x1xf32>
    %98 = arith.subf %97, %87 : vector<8x1xf32>
    %99 = vector.shape_cast %98 : vector<8x1xf32> to vector<1x8x1xf32>
    %cst_37 = arith.constant dense<0.000000e+00> : vector<1xf32>
    %100 = vector.multi_reduction <add>, %99, %cst_37 [1, 2] : vector<1x8x1xf32> to vector<1xf32>
    %101 = vector.shape_cast %100 : vector<1xf32> to vector<1x1x1xf32>
    %102 = vector.extract %101[0, 0, 0] : f32 from vector<1x1x1xf32>
    %cst_38 = arith.constant 8.000000e+00 : f32
    %103 = arith.divf %102, %cst_38 : f32
    %c0_39 = arith.constant 0 : index
    %c0_40 = arith.constant 0 : index
    %104 = memref.load %arg3[%c0_39, %c0_40] : memref<1x1xf32, #tpu.memory_space<smem>>
    memref.store %103, %arg3[%c0_39, %c0_40] : memref<1x1xf32, #tpu.memory_space<smem>>
    return
  }
}

</mosaic_0001>

<llo_original>
// kernel: tpu_custom_call.1
$region0: #{tpu_custom_call.1}
  #allocation0 [shape = 'u32[]', space=smem, size = 0x4, offset = 0x4, fixed_abs, tag = 'smem constant byte address 0x4 - core index']
  #allocation1 [shape = 'u32[144,128]{1,0:T(1,128)}', space=vmem, size = 0x12000, scoped, tag = 'internal scratch']
  #allocation2 [shape = 'f32[16,32]{1,0:T(8,128)}', space=vmem, size = 0x2000, scoped, tag = 'scratch operand']
  %s0 = inlined_call_operand.vmem [shape: f32[8,32], index: 0, kind: input, shape index: {}]
  %s1 = inlined_call_operand.vmem [shape: f32[8,32], index: 1, kind: input, shape index: {}]
  %s2 = inlined_call_operand.vmem [shape: f32[104,64], index: 2, kind: input, shape index: {}]
  %s3 = inlined_call_operand.hbm [shape: f32[1,1], index: 3, kind: output, shape index: {}]
  %s4 = sld [smem:[#allocation0]]
  $region22: #{tpu_custom_call.1} parent=0
    _
  %s6 = ssub.s32 1, %s4
  %s7 = scalar_select 0, %s6, %s4
  $region1: #{tpu_custom_call.1} parent=0
    #allocation3 [shape = 'u8[512]{0}', space=smem, size = 0x200, scoped, tag = 'output window, operand 0, single buffered']
    #allocation4 [shape = 's32[1]{0}', space=sflag, size = 0x4, scoped, tag = 'scoped memory for tpu_custom_call.1']
    %8 = vsyncpa [#allocation4], 0
    // Predicated region
    $region2: #{tpu_custom_call.1} parent=1 // pred_check
      _
    $region3: #{tpu_custom_call.1} parent=1 // pred_check_branch
      %10 = sbr.rel (0) target = $region5
    $region4: #{tpu_custom_call.1} parent=1 // pred_region
      _
    $region5: #{tpu_custom_call.1} parent=1 // pred_fallthru
      _
    // Predicated region
    $region6: #{tpu_custom_call.1} parent=1 // pred_check
      _
    $region7: #{tpu_custom_call.1} parent=1 // pred_check_branch
      %12 = sbr.rel (0) target = $region9
    $region8: #{tpu_custom_call.1} parent=1 // pred_region
      _
    $region9: #{tpu_custom_call.1} parent=1 // pred_fallthru
      _
    // Predicated region
    $region10: #{tpu_custom_call.1} parent=1 // pred_check
      _
    $region11: #{tpu_custom_call.1} parent=1 // pred_check_branch
      %14 = sbr.rel (0) target = $region13
    $region12: #{tpu_custom_call.1} parent=1 // pred_region
      _
    $region13: #{tpu_custom_call.1} parent=1 // pred_fallthru
      _
    %v15 = vld [vmem:[%s2] sm:$0xff]
    %v16 = vld [vmem:[%s2 + $0x8] sm:$0xff]
    %v17 = vld [vmem:[%s2 + $0x10] sm:$0xff]
    %v18 = vld [vmem:[%s2 + $0x18] sm:$0xff]
    %v19 = vld [vmem:[%s2 + $0x20] sm:$0xff]
    %v20 = vld [vmem:[%s2 + $0x28] sm:$0xff]
    %v21 = vld [vmem:[%s2 + $0x30] sm:$0xff]
    %v22 = vld [vmem:[%s2 + $0x38] sm:$0xff]
    %v23 = vld [vmem:[%s2 + $0x40] sm:$0xff]
    %v24 = vld [vmem:[%s2 + $0x48] sm:$0xff]
    %v25 = vld [vmem:[%s2 + $0x50] sm:$0xff]
    %v26 = vld [vmem:[%s2 + $0x58] sm:$0xff]
    %v27 = vld [vmem:[%s2 + $0x60] sm:$0x1]
    %v28 = vld [vmem:[%s2 + $0x61] sm:$0x1]
    %v29 = vld [vmem:[%s2 + $0x62] sm:$0x1]
    %v30 = vld [vmem:[%s2 + $0x63] sm:$0x1]
    %v31 = vld [vmem:[%s0] sm:$0xff]
    %vm32 = vcmask 261120
    %33 = vst.msk [vmem:[#allocation2] sm:$0xff] %vm32, %v31
    %v34 = vld [vmem:[%s1] sm:$0xff]
    %35 = vst.msk [vmem:[#allocation2 + $0x8] sm:$0xff] %vm32, %v34
    %v36 = vld [vmem:[#allocation2] sm:$0xff]
    %v37 = vld [vmem:[#allocation2 + $0x8] sm:$0xff]
    %v38 = vlaneseq
    %v39 = vshrl.u32 %v38, 7
    %v40 = vsub.s32 0, %v39
    %v41 = vrot.slane %v27, %v40
    %v43 = vsel %vm32, %v36, 0
    %v46 = vsel %vm32, %v37, 0
    %48 = vmatprep.subr.mxu0 0.0
    %49 = vmatpush1.msra.mxu0 %v15
    %50 = vmatprep.subr.mxu0 0.0
    %51 = vmatpush1.msra.mxu0 %v16
    %52 = vmatprep.subr.mxu0 0.0
    %53 = vmatpush1.msra.mxu0 %v17
    %54 = vmatprep.subr.mxu0 0.0
    %55 = vmatpush1.msra.mxu0 %v18
    %56 = vmatprep.subr.mxu0 0.0
    %57 = vmatpush1.msra.mxu0 0.0
    %58 = vmatprep.subr.mxu0 0.0
    %59 = vmatpush1.msra.mxu0 0.0
    %60 = vmatprep.subr.mxu0 0.0
    %61 = vmatpush1.msra.mxu0 0.0
    %62 = vmatprep.subr.mxu0 0.0
    %63 = vmatpush1.msra.mxu0 0.0
    %64 = vmatprep.subr.mxu0 0.0
    %65 = vmatpush1.msra.mxu0 0.0
    %66 = vmatprep.subr.mxu0 0.0
    %67 = vmatpush1.msra.mxu0 0.0
    %68 = vmatprep.subr.mxu0 0.0
    %69 = vmatpush1.msra.mxu0 0.0
    %70 = vmatprep.subr.mxu0 0.0
    %71 = vmatpush1.msra.mxu0 0.0
    %72 = vmatprep.subr.mxu0 0.0
    %73 = vmatpush1.msra.mxu0 0.0
    %74 = vmatprep.subr.mxu0 0.0
    %75 = vmatpush1.msra.mxu0 0.0
    %76 = vmatprep.subr.mxu0 0.0
    %77 = vmatpush1.msra.mxu0 0.0
    %78 = vmatprep.subr.mxu0 0.0
    %79 = vmatpush1.msra.mxu0 0.0
    %80 = vmatprep.subr.mxu0 0.0
    %81 = vmatpush1.msra.mxu0 0.0
    %82 = vmatprep.subr.mxu0 0.0
    %83 = vmatpush1.msra.mxu0 0.0
    %84 = vmatprep.subr.mxu0 0.0
    %85 = vmatpush1.msra.mxu0 0.0
    %86 = vmatprep.subr.mxu0 0.0
    %87 = vmatpush1.msra.mxu0 0.0
    %88 = vmatprep.subr.mxu0 0.0
    %89 = vmatpush1.msra.mxu0 0.0
    %90 = vmatprep.subr.mxu0 0.0
    %91 = vmatpush1.msra.mxu0 0.0
    %92 = vmatprep.subr.mxu0 0.0
    %93 = vmatpush1.msra.mxu0 0.0
    %94 = vmatprep.subr.mxu0 0.0
    %95 = vmatpush1.msra.mxu0 0.0
    %96 = vmatprep.subr.mxu0 0.0
    %97 = vmatpush1.msra.mxu0 0.0
    %98 = vmatprep.subr.mxu0 0.0
    %99 = vmatpush1.msra.mxu0 0.0
    %100 = vmatprep.subr.mxu0 0.0
    %101 = vmatpush1.msra.mxu0 0.0
    %102 = vmatprep.subr.mxu0 0.0
    %103 = vmatpush1.msra.mxu0 0.0
    %104 = vmatprep.subr.mxu0 0.0
    %105 = vmatpush1.msra.mxu0 0.0
    %106 = vmatprep.subr.mxu0 0.0
    %107 = vmatpush1.msra.mxu0 0.0
    %108 = vmatprep.subr.mxu0 0.0
    %109 = vmatpush1.msra.mxu0 0.0
    %110 = vmatprep.subr.mxu0 0.0
    %111 = vmatpush1.msra.mxu0 0.0
    %112 = vmatprep.mubr.f32.mxu0 0.0
    %113 = vmatmul.mubr.f32.gmra.mrb[0].mxu0 %v43
    %v114 = vpop.f32.mrb[0].mxu0
    %v115 = vadd.f32 %v41, %v114
    %v116 = vpop.f32.mrb[0].mxu0
    %117 = vmatprep.mubr.f32.mxu0 0.0
    %118 = vmatmul.mubr.f32.gmra.mrb[0].mxu0 %v46
    %v119 = vpop.f32.mrb[0].mxu0
    %v120 = vadd.f32 %v41, %v119
    %v121 = vpop.f32.mrb[0].mxu0
    %122 = vdwg.mxu0
    %v123 = vmax.f32 %v115, 0.0
    %v124 = vmax.f32 %v120, 0.0
    %v125 = vlaneseq
    %v126 = vshrl.u32 %v125, 7
    %v127 = vsub.s32 0, %v126
    %v128 = vrot.slane %v28, %v127
    %vm129 = vcmask 523264
    %v131 = vsel %vm129, %v123, 0
    %v134 = vsel %vm129, %v124, 0
    %136 = vmatprep.subr.mxu0 0.0
    %137 = vmatpush1.msra.mxu0 %v19
    %138 = vmatprep.subr.mxu0 0.0
    %139 = vmatpush1.msra.mxu0 %v20
    %140 = vmatprep.subr.mxu0 0.0
    %141 = vmatpush1.msra.mxu0 %v21
    %142 = vmatprep.subr.mxu0 0.0
    %143 = vmatpush1.msra.mxu0 %v22
    %144 = vmatprep.subr.mxu0 0.0
    %145 = vmatpush1.msra.mxu0 %v23
    %146 = vmatprep.subr.mxu0 0.0
    %147 = vmatpush1.msra.mxu0 %v24
    %148 = vmatprep.subr.mxu0 0.0
    %149 = vmatpush1.msra.mxu0 %v25
    %150 = vmatprep.subr.mxu0 0.0
    %151 = vmatpush1.msra.mxu0 %v26
    %152 = vmatprep.subr.mxu0 0.0
    %153 = vmatpush1.msra.mxu0 0.0
    %154 = vmatprep.subr.mxu0 0.0
    %155 = vmatpush1.msra.mxu0 0.0
    %156 = vmatprep.subr.mxu0 0.0
    %157 = vmatpush1.msra.mxu0 0.0
    %158 = vmatprep.subr.mxu0 0.0
    %159 = vmatpush1.msra.mxu0 0.0
    %160 = vmatprep.subr.mxu0 0.0
    %161 = vmatpush1.msra.mxu0 0.0
    %162 = vmatprep.subr.mxu0 0.0
    %163 = vmatpush1.msra.mxu0 0.0
    %164 = vmatprep.subr.mxu0 0.0
    %165 = vmatpush1.msra.mxu0 0.0
    %166 = vmatprep.subr.mxu0 0.0
    %167 = vmatpush1.msra.mxu0 0.0
    %168 = vmatprep.subr.mxu0 0.0
    %169 = vmatpush1.msra.mxu0 0.0
    %170 = vmatprep.subr.mxu0 0.0
    %171 = vmatpush1.msra.mxu0 0.0
    %172 = vmatprep.subr.mxu0 0.0
    %173 = vmatpush1.msra.mxu0 0.0
    %174 = vmatprep.subr.mxu0 0.0
    %175 = vmatpush1.msra.mxu0 0.0
    %176 = vmatprep.subr.mxu0 0.0
    %177 = vmatpush1.msra.mxu0 0.0
    %178 = vmatprep.subr.mxu0 0.0
    %179 = vmatpush1.msra.mxu0 0.0
    %180 = vmatprep.subr.mxu0 0.0
    %181 = vmatpush1.msra.mxu0 0.0
    %182 = vmatprep.subr.mxu0 0.0
    %183 = vmatpush1.msra.mxu0 0.0
    %184 = vmatprep.subr.mxu0 0.0
    %185 = vmatpush1.msra.mxu0 0.0
    %186 = vmatprep.subr.mxu0 0.0
    %187 = vmatpush1.msra.mxu0 0.0
    %188 = vmatprep.subr.mxu0 0.0
    %189 = vmatpush1.msra.mxu0 0.0
    %190 = vmatprep.subr.mxu0 0.0
    %191 = vmatpush1.msra.mxu0 0.0
    %192 = vmatprep.subr.mxu0 0.0
    %193 = vmatpush1.msra.mxu0 0.0
    %194 = vmatprep.subr.mxu0 0.0
    %195 = vmatpush1.msra.mxu0 0.0
    %196 = vmatprep.subr.mxu0 0.0
    %197 = vmatpush1.msra.mxu0 0.0
    %198 = vmatprep.subr.mxu0 0.0
    %199 = vmatpush1.msra.mxu0 0.0
    %200 = vmatprep.mubr.f32.mxu0 0.0
    %201 = vmatmul.mubr.f32.gmra.mrb[0].mxu0 %v131
    %v202 = vpop.f32.mrb[0].mxu0
    %v203 = vadd.f32 %v128, %v202
    %v204 = vpop.f32.mrb[0].mxu0
    %205 = vmatprep.mubr.f32.mxu0 0.0
    %206 = vmatmul.mubr.f32.gmra.mrb[0].mxu0 %v134
    %v207 = vpop.f32.mrb[0].mxu0
    %v208 = vadd.f32 %v128, %v207
    %v209 = vpop.f32.mrb[0].mxu0
    %210 = vdwg.mxu0
    %v211 = vmul.f32 %v203, %v203
    %vm212 = vcmask 130048
    %v213 = vsel %vm212, %v211, 0.0
    %214 = vadd.xlane.f32.xlu0 %v213
    %v215 = vpop.xlane.xlu0 %214
    %v216 = vmax.f32 %v215, 1e-24
    %v217 = vrsqrt.pop %v216
    %v218 = vmul.f32 %v203, %v217
    %v219 = vsel %vm212, %v218, 0.0
    %220 = vadd.xlane.f32.xlu0 %v219
    %v221 = vpop.xlane.xlu0 %220
    %v222 = vrcp.pop 16.0
    %v223 = vmul.f32 %v221, %v222
    %v224 = vsub.f32 %v218, %v223
    %v225 = vmul.f32 %v224, %v224
    %v226 = vsel %vm212, %v225, 0.0
    %227 = vadd.xlane.f32.xlu0 %v226
    %v228 = vpop.xlane.xlu0 %227
    %v229 = vmul.f32 %v228, %v222
    %v230 = vadd.f32 %v229, 1e-05
    %v231 = vrsqrt.pop %v230
    %v232 = vmul.f32 %v224, %v231
    %v233 = vlaneseq
    %v234 = vshrl.u32 %v233, 7
    %v235 = vsub.s32 0, %v234
    %v236 = vrot.slane %v29, %v235
    %v237 = vmul.f32 %v232, %v236
    %v238 = vlaneseq
    %v239 = vshrl.u32 %v238, 7
    %v240 = vsub.s32 0, %v239
    %v241 = vrot.slane %v30, %v240
    %v242 = vadd.f32 %v237, %v241
    %v243 = vmul.f32 %v242, 14.285714
    %v244 = vmul.f32 %v208, %v208
    %246 = vrot.lane.b32.xlu0 %v244, 112
    %v247 = vpop.permute.xlu0 %246
    %v249 = vsel %vm212, %v247, 0.0
    %250 = vadd.xlane.f32.xlu0 %v249
    %v251 = vpop.xlane.xlu0 %250
    %v252 = vmax.f32 %v251, 1e-24
    %v253 = vrsqrt.pop %v252
    %v254 = vmul.f32 %v208, %v253
    %256 = vrot.lane.b32.xlu0 %v254, 112
    %v257 = vpop.permute.xlu0 %256
    %v259 = vsel %vm212, %v257, 0.0
    %260 = vadd.xlane.f32.xlu0 %v259
    %v261 = vpop.xlane.xlu0 %260
    %v262 = vmul.f32 %v261, %v222
    %v263 = vsub.f32 %v254, %v262
    %v264 = vmul.f32 %v263, %v263
    %266 = vrot.lane.b32.xlu0 %v264, 112
    %v267 = vpop.permute.xlu0 %266
    %v269 = vsel %vm212, %v267, 0.0
    %270 = vadd.xlane.f32.xlu0 %v269
    %v271 = vpop.xlane.xlu0 %270
    %v272 = vmul.f32 %v271, %v222
    %v273 = vadd.f32 %v272, 1e-05
    %v274 = vrsqrt.pop %v273
    %v275 = vmul.f32 %v263, %v274
    %277 = vrot.lane.b32.xlu0 %v236, 16
    %v278 = vpop.permute.xlu0 %277
    %v280 = vmul.f32 %v275, %v278
    %282 = vrot.lane.b32.xlu0 %v241, 16
    %v283 = vpop.permute.xlu0 %282
    %v285 = vadd.f32 %v280, %v283
    %287 = vrot.lane.b32.xlu0 %v285, 112
    %v288 = vpop.permute.xlu0 %287
    %v290 = vmul.f32 %v243, %v288
    %v291 = vsel %vm212, %v290, 0.0
    %292 = vadd.xlane.f32.xlu0 %v291
    %v293 = vpop.xlane.xlu0 %292
    %v295 = vsel %vm212, %v243, 0
    %v297 = vsel %vm212, %v288, 0
    %299 = vmatprep.subr.mxu0 0.0
    %300 = vmatpush1.xpose.msra.mxu0 %v297
    %301 = vmatprep.subr.mxu0 0.0
    %302 = vmatpush1.xpose.msra.mxu0 0.0
    %303 = vmatprep.subr.mxu0 0.0
    %304 = vmatpush1.xpose.msra.mxu0 0.0
    %305 = vmatprep.subr.mxu0 0.0
    %306 = vmatpush1.xpose.msra.mxu0 0.0
    %307 = vmatprep.subr.mxu0 0.0
    %308 = vmatpush1.xpose.msra.mxu0 0.0
    %309 = vmatprep.subr.mxu0 0.0
    %310 = vmatpush1.xpose.msra.mxu0 0.0
    %311 = vmatprep.subr.mxu0 0.0
    %312 = vmatpush1.xpose.msra.mxu0 0.0
    %313 = vmatprep.subr.mxu0 0.0
    %314 = vmatpush1.xpose.msra.mxu0 0.0
    %315 = vmatprep.subr.mxu0 0.0
    %316 = vmatpush1.xpose.msra.mxu0 0.0
    %317 = vmatprep.subr.mxu0 0.0
    %318 = vmatpush1.xpose.msra.mxu0 0.0
    %319 = vmatprep.subr.mxu0 0.0
    %320 = vmatpush1.xpose.msra.mxu0 0.0
    %321 = vmatprep.subr.mxu0 0.0
    %322 = vmatpush1.xpose.msra.mxu0 0.0
    %323 = vmatprep.subr.mxu0 0.0
    %324 = vmatpush1.xpose.msra.mxu0 0.0
    %325 = vmatprep.subr.mxu0 0.0
    %326 = vmatpush1.xpose.msra.mxu0 0.0
    %327 = vmatprep.subr.mxu0 0.0
    %328 = vmatpush1.xpose.msra.mxu0 0.0
    %329 = vmatprep.subr.mxu0 0.0
    %330 = vmatpush1.xpose.msra.mxu0 0.0
    %331 = vmatprep.subr.mxu0 0.0
    %332 = vmatpush1.xpose.msra.mxu0 0.0
    %333 = vmatprep.subr.mxu0 0.0
    %334 = vmatpush1.xpose.msra.mxu0 0.0
    %335 = vmatprep.subr.mxu0 0.0
    %336 = vmatpush1.xpose.msra.mxu0 0.0
    %337 = vmatprep.subr.mxu0 0.0
    %338 = vmatpush1.xpose.msra.mxu0 0.0
    %339 = vmatprep.subr.mxu0 0.0
    %340 = vmatpush1.xpose.msra.mxu0 0.0
    %341 = vmatprep.subr.mxu0 0.0
    %342 = vmatpush1.xpose.msra.mxu0 0.0
    %343 = vmatprep.subr.mxu0 0.0
    %344 = vmatpush1.xpose.msra.mxu0 0.0
    %345 = vmatprep.subr.mxu0 0.0
    %346 = vmatpush1.xpose.msra.mxu0 0.0
    %347 = vmatprep.subr.mxu0 0.0
    %348 = vmatpush1.xpose.msra.mxu0 0.0
    %349 = vmatprep.subr.mxu0 0.0
    %350 = vmatpush1.xpose.msra.mxu0 0.0
    %351 = vmatprep.subr.mxu0 0.0
    %352 = vmatpush1.xpose.msra.mxu0 0.0
    %353 = vmatprep.subr.mxu0 0.0
    %354 = vmatpush1.xpose.msra.mxu0 0.0
    %355 = vmatprep.subr.mxu0 0.0
    %356 = vmatpush1.xpose.msra.mxu0 0.0
    %357 = vmatprep.subr.mxu0 0.0
    %358 = vmatpush1.xpose.msra.mxu0 0.0
    %359 = vmatprep.subr.mxu0 0.0
    %360 = vmatpush1.xpose.msra.mxu0 0.0
    %361 = vmatprep.subr.mxu0 0.0
    %362 = vmatpush1.xpose.msra.mxu0 0.0
    %363 = vmatprep.mubr.f32.mxu0 0.0
    %364 = vmatmul.mubr.f32.gmra.mrb[0].mxu0 %v295
    %v365 = vpop.f32.mrb[0].mxu0
    %v366 = vadd.f32 0.0, %v365
    %v367 = vpop.f32.mrb[0].mxu0
    %368 = vdwg.mxu0
    %vm369 = vcmask 64512
    %v370 = vsel %vm369, %v366, -inf
    %371 = vmax.xlane.f32.xlu0 %v370
    %v372 = vpop.xlane.xlu0 %371
    %v373 = vsub.f32 %v366, %v372
    %v374 = vmul.f32 %v373, 1.442695
    %v375 = vpow.pop %v374
    %v376 = vsel %vm369, %v375, 0.0
    %377 = vadd.xlane.f32.xlu0 %v376
    %v378 = vpop.xlane.xlu0 %377
    %v379 = vlog2.pop %v378
    %v380 = vmul.f32 %v379, 0.6931472
    %v381 = vadd.f32 %v380, %v372
    %v382 = vsub.f32 %v381, %v293
    %vm383 = vcmask 7168
    %v384 = vsel %vm383, %v382, 0.0
    %385 = vadd.xlane.f32.xlu0 %v384
    %v386 = vpop.xlane.xlu0 %385
    %v387 = vrot.slane %v386, 4
    %v388 = vadd.f32 %v386, %v387
    %v389 = vrot.slane %v388, 2
    %v390 = vadd.f32 %v388, %v389
    %v391 = vrot.slane %v390, 1
    %v392 = vadd.f32 %v390, %v391
    %s393 = vtos %v392
    %v394 = vrcp.pop 8.0
    %s395 = vtos %v394
    %s396 = smul.f32 %s393, %s395
    %s397 = scalar_lea.smem [#allocation3], 0
    %398 = sst [smem:[%s397]] %s396
    // Predicated region
    $region14: #{tpu_custom_call.1} parent=1 // pred_check
      _
    $region15: #{tpu_custom_call.1} parent=1 // pred_check_branch
      %400 = sbr.rel (0) target = $region17
    $region16: #{tpu_custom_call.1} parent=1 // pred_region
      %s402 = ssub.s32 16, 16
      %403 = vsyncadd [#allocation4], %s402
      %406 = dma.smem_to_hbm [#allocation3], 16, %s3, [#allocation4]
    $region17: #{tpu_custom_call.1} parent=1 // pred_fallthru
      _
    // Predicated region
    $region18: #{tpu_custom_call.1} parent=1 // pred_check
      _
    $region19: #{tpu_custom_call.1} parent=1 // pred_check_branch
      %408 = sbr.rel (0) target = $region21
    $region20: #{tpu_custom_call.1} parent=1 // pred_region
      %409 = dma.done [#allocation4], 16
    $region21: #{tpu_custom_call.1} parent=1 // pred_fallthru
      _
    %410 = sfence
    %411 = vsyncpa [#allocation4], 1

</llo_original>
